<compile_context>
chip_gen: v6e
topology: v6e:2x2x1
jax: 0.10.0
libtpu: 0.0.40
codegen_flags: <defaults>
</compile_context>

<pallas_src>
import numpy as np
import jax
import jax.numpy as jnp
from jax.experimental import pallas as pl
from jax.experimental.pallas import tpu as pltpu


# ----------------------------- fused Pallas kernel -----------------------------
def _correlation_kernel(v_ref, q_ref, a_ref,
                        wv_ref, bv_ref, wq_ref, bq_ref, wa_ref, ba_ref,
                        o_ref):
    """Fused Correlation forward for the whole batch in one invocation.

    v_ref:(B,R,Vf) q_ref:(B,E,Qf) a_ref:(B,R,E) in f32 (cast to bf16 in-kernel);
    weights bf16, biases f32; o_ref:(B,mid) f32.
    """
    f32 = jnp.float32
    bf16 = jnp.bfloat16

    B, R, Vf = v_ref.shape
    E, Qf = q_ref.shape[1], q_ref.shape[2]
    mid = wv_ref.shape[1]

    # In-kernel bf16 casts (a handful of VPU ops on otherwise-idle VALU slots).
    # Merge batch into the matmul M dim so the MXU sees (B*R, Vf) / (B*E, Qf).
    v = v_ref[...].reshape(B * R, Vf).astype(bf16)
    q = q_ref[...].reshape(B * E, Qf).astype(bf16)

    # Two independent MXU matmuls pushed back-to-back (epilogues after both)
    # so their fill/drain latency overlaps; f32 accumulation.
    v_raw = jnp.dot(v, wv_ref[...], preferred_element_type=f32)    # (B*R, mid)
    q_raw = jnp.dot(q, wq_ref[...], preferred_element_type=f32)    # (B*E, mid)

    # f32 bias + ReLU epilogues (v5e has no bf16 VPU).
    v_lin = jnp.maximum(v_raw + bv_ref[...], 0.0)                  # (B*R, mid) f32
    q_lin = jnp.maximum(q_raw + bq_ref[...], 0.0)                  # (B*E, mid) f32

    # tmp[b,r,c] = sum_e atten[b,r,e] * q_lin[b,e,c]  -> batched MXU matmul.
    a = a_ref[...].astype(bf16)                                    # (B, R, E)
    q_lin_b = q_lin.reshape(B, E, mid).astype(bf16)                # (B, E, mid)
    tmp = jnp.einsum('bre,bem->brm', a, q_lin_b,
                     preferred_element_type=f32)                   # (B, R, mid) f32

    prod = v_lin.reshape(B, R, mid) * tmp                          # (B, R, mid) f32, VPU

    # h[b,c] = sum_r prod[b,r,c]: f32 sublane reduce (XLU) — shorter critical
    # path than another MXU round-trip, and keeps the R-sum in f32.
    h = jnp.sum(prod, axis=1)                                      # (B, mid) f32

    # lin_atten (no activation).
    out = jnp.dot(h.astype(bf16), wa_ref[...], preferred_element_type=f32) + ba_ref[...]
    o_ref[...] = out.astype(o_ref.dtype)                           # (B, mid)


def correlation_forward(v, q, atten, wv, bv, wq, bq, wa, ba):
    """Pallas Correlation forward.  v:(B,R,Vf) q:(B,E,Qf) atten:(B,R,E) -> (B,1,mid)."""
    B = v.shape[0]
    mid = wv.shape[1]

    # Everything (activations + resident weights) is a few KiB — one grid-less
    # invocation with whole arrays in VMEM; no pipelining needed.
    vmem = pl.BlockSpec(memory_space=pltpu.MemorySpace.VMEM)

    out = pl.pallas_call(
        _correlation_kernel,
        out_shape=jax.ShapeDtypeStruct((B, mid), jnp.float32),
        in_specs=[vmem] * 9,
        out_specs=vmem,
    )(v, q, atten, wv, bv, wq, bq, wa, ba)

    return out[:, None, :]                                         # (B, 1, mid)


# ------------------------------ params & reference ------------------------------
def init_fcnet_params(key, in_size, out_size):
    """FCNet = weight_norm(nn.Linear, dim=None); W_eff = g * V / ||V||_F folded here."""
    kv, kb, kg = jax.random.split(key, 3)
    bound = 1.0 / np.sqrt(in_size)
    weight_v = jax.random.uniform(kv, (out_size, in_size), jnp.float32, -bound, bound)
    bias = jax.random.uniform(kb, (out_size,), jnp.float32, -bound, bound)
    g = jax.random.uniform(kg, (), jnp.float32, 0.5, 1.5) * jnp.linalg.norm(weight_v)
    w_eff = (g / jnp.linalg.norm(weight_v)) * weight_v          # (out, in)
    return w_eff.T, bias.reshape(1, out_size)                   # (in, out), (1, out)


def correlation_reference(params, v, q, atten):
    """Pure-JAX f32 reference matching the PyTorch forward exactly."""
    wv, bv = params['lin_v']
    wq, bq = params['lin_q']
    wa, ba = params['lin_atten']
    v_lin = jax.nn.relu(jnp.einsum('brk,km->brm', v, wv) + bv)
    q_lin = jax.nn.relu(jnp.einsum('bek,km->bem', q, wq) + bq)
    h = jnp.einsum('brm,bre,bem->bm', v_lin, atten, q_lin)
    out = jnp.einsum('bm,mn->bn', h, wa) + ba
    return out[:, None, :]


# ------------------------------------ main ---------------------------------------
if __name__ == "__main__":
    key = jax.random.PRNGKey(0)
    B, R, E = 2, 8, 8                  # images, relations, entities
    V_FEAT, Q_FEAT, MID = 64, 64, 128  # mid_features = 128 -> lane-dense output

    keys = jax.random.split(key, 6)
    params = {
        'lin_v': init_fcnet_params(keys[0], V_FEAT, MID),
        'lin_q': init_fcnet_params(keys[1], Q_FEAT, MID),
        'lin_atten': init_fcnet_params(keys[2], MID, MID),
    }

    v = jax.random.normal(keys[3], (B, R, V_FEAT), jnp.float32)
    q = jax.random.normal(keys[4], (B, E, Q_FEAT), jnp.float32)
    # mirrors the upstream SelfAttention: softmax over the flattened (R*E) logits
    atten_logits = jax.random.normal(keys[5], (B, R, E), jnp.float32)
    atten = jax.nn.softmax(atten_logits.reshape(B, -1), axis=-1).reshape(B, R, E)

    # Pre-cast weights to bf16 ONCE (MXU-native); biases stay f32 for the epilogue.
    kernel_params = []
    for name in ('lin_v', 'lin_q', 'lin_atten'):
        w, b = params[name]
        kernel_params += [w.astype(jnp.bfloat16), b]
    kernel_params = tuple(kernel_params)

    fwd = jax.jit(correlation_forward)
    out = fwd(v, q, atten, *kernel_params)
    out = jax.block_until_ready(out)

    ref = correlation_reference(params, v, q, atten)
    assert out.shape == (B, 1, MID)
    assert bool(jnp.all(jnp.isfinite(out)))
    rel_err = float(jnp.max(jnp.abs(out - ref)) / (jnp.max(jnp.abs(ref)) + 1e-6))
    assert rel_err < 5e-2, f"relative error too large: {rel_err}"
    print("KERNEL_OK")
</pallas_src>

<mosaic_0001>
module attributes {stable_mosaic.version = 11 : i64} {
  func.func @_correlation_kernel(%arg0: memref<2x8x64xf32, #tpu.memory_space<vmem>>, %arg1: memref<2x8x64xf32, #tpu.memory_space<vmem>>, %arg2: memref<2x8x8xf32, #tpu.memory_space<vmem>>, %arg3: memref<64x128xbf16, #tpu.memory_space<vmem>>, %arg4: memref<1x128xf32, #tpu.memory_space<vmem>>, %arg5: memref<64x128xbf16, #tpu.memory_space<vmem>>, %arg6: memref<1x128xf32, #tpu.memory_space<vmem>>, %arg7: memref<128x128xbf16, #tpu.memory_space<vmem>>, %arg8: memref<1x128xf32, #tpu.memory_space<vmem>>, %arg9: memref<2x128xf32, #tpu.memory_space<vmem>>) attributes {dimension_semantics = [], scalar_prefetch = 0 : i64, scratch_operands = 0 : i64, tpu.core_type = #tpu.core_type<tc>} {
    %c0 = arith.constant 0 : index
    %c0_0 = arith.constant 0 : index
    %c0_1 = arith.constant 0 : index
    %0 = vector.load %arg0[%c0, %c0_0, %c0_1] : memref<2x8x64xf32, #tpu.memory_space<vmem>>, vector<2x8x64xf32>
    %1 = vector.shape_cast %0 : vector<2x8x64xf32> to vector<16x64xf32>
    %2 = arith.truncf %1 : vector<16x64xf32> to vector<16x64xbf16>
    %c0_2 = arith.constant 0 : index
    %c0_3 = arith.constant 0 : index
    %c0_4 = arith.constant 0 : index
    %3 = vector.load %arg1[%c0_2, %c0_3, %c0_4] : memref<2x8x64xf32, #tpu.memory_space<vmem>>, vector<2x8x64xf32>
    %4 = vector.shape_cast %3 : vector<2x8x64xf32> to vector<16x64xf32>
    %5 = arith.truncf %4 : vector<16x64xf32> to vector<16x64xbf16>
    %c0_5 = arith.constant 0 : index
    %c0_6 = arith.constant 0 : index
    %6 = vector.load %arg3[%c0_5, %c0_6] : memref<64x128xbf16, #tpu.memory_space<vmem>>, vector<64x128xbf16>
    %cst = arith.constant dense<0.000000e+00> : vector<16x128xf32>
    %7 = tpu.matmul %2, %6, %cst {dimension_numbers = #tpu.dot_dimension_numbers<[1], [0], [0], [1], [0, 0, 1, 1], [], []>} : vector<16x64xbf16>, vector<64x128xbf16>, vector<16x128xf32> -> vector<16x128xf32>
    %c0_7 = arith.constant 0 : index
    %c0_8 = arith.constant 0 : index
    %8 = vector.load %arg5[%c0_7, %c0_8] : memref<64x128xbf16, #tpu.memory_space<vmem>>, vector<64x128xbf16>
    %cst_9 = arith.constant dense<0.000000e+00> : vector<16x128xf32>
    %9 = tpu.matmul %5, %8, %cst_9 {dimension_numbers = #tpu.dot_dimension_numbers<[1], [0], [0], [1], [0, 0, 1, 1], [], []>} : vector<16x64xbf16>, vector<64x128xbf16>, vector<16x128xf32> -> vector<16x128xf32>
    %c0_10 = arith.constant 0 : index
    %c0_11 = arith.constant 0 : index
    %10 = vector.load %arg4[%c0_10, %c0_11] : memref<1x128xf32, #tpu.memory_space<vmem>>, vector<1x128xf32>
    %11 = vector.broadcast %10 : vector<1x128xf32> to vector<16x128xf32>
    %12 = arith.addf %7, %11 : vector<16x128xf32>
    %cst_12 = arith.constant 0.000000e+00 : f32
    %13 = vector.broadcast %cst_12 : f32 to vector<16x128xf32>
    %14 = arith.maximumf %12, %13 : vector<16x128xf32>
    %c0_13 = arith.constant 0 : index
    %c0_14 = arith.constant 0 : index
    %15 = vector.load %arg6[%c0_13, %c0_14] : memref<1x128xf32, #tpu.memory_space<vmem>>, vector<1x128xf32>
    %16 = vector.broadcast %15 : vector<1x128xf32> to vector<16x128xf32>
    %17 = arith.addf %9, %16 : vector<16x128xf32>
    %cst_15 = arith.constant 0.000000e+00 : f32
    %18 = vector.broadcast %cst_15 : f32 to vector<16x128xf32>
    %19 = arith.maximumf %17, %18 : vector<16x128xf32>
    %c0_16 = arith.constant 0 : index
    %c0_17 = arith.constant 0 : index
    %c0_18 = arith.constant 0 : index
    %20 = vector.load %arg2[%c0_16, %c0_17, %c0_18] : memref<2x8x8xf32, #tpu.memory_space<vmem>>, vector<2x8x8xf32>
    %21 = arith.truncf %20 : vector<2x8x8xf32> to vector<2x8x8xbf16>
    %22 = vector.shape_cast %19 : vector<16x128xf32> to vector<2x8x128xf32>
    %23 = arith.truncf %22 : vector<2x8x128xf32> to vector<2x8x128xbf16>
    "tpu.trace_start"() <{level = 10 : i32, message = "bre,bem->brm"}> : () -> ()
    %cst_19 = arith.constant dense<0.000000e+00> : vector<2x8x128xf32>
    %24 = tpu.matmul %21, %23, %cst_19 {dimension_numbers = #tpu.dot_dimension_numbers<[2], [1], [1], [2], [0, 0, 0, 1, 1, 2], [0], [0]>} : vector<2x8x8xbf16>, vector<2x8x128xbf16>, vector<2x8x128xf32> -> vector<2x8x128xf32>
    "tpu.trace_stop"() : () -> ()
    %25 = vector.shape_cast %14 : vector<16x128xf32> to vector<2x8x128xf32>
    %26 = arith.mulf %25, %24 : vector<2x8x128xf32>
    %cst_20 = arith.constant dense<0.000000e+00> : vector<2x128xf32>
    %27 = vector.multi_reduction <add>, %26, %cst_20 [1] : vector<2x8x128xf32> to vector<2x128xf32>
    %28 = arith.truncf %27 : vector<2x128xf32> to vector<2x128xbf16>
    %c0_21 = arith.constant 0 : index
    %c0_22 = arith.constant 0 : index
    %29 = vector.load %arg7[%c0_21, %c0_22] : memref<128x128xbf16, #tpu.memory_space<vmem>>, vector<128x128xbf16>
    %cst_23 = arith.constant dense<0.000000e+00> : vector<2x128xf32>
    %30 = tpu.matmul %28, %29, %cst_23 {dimension_numbers = #tpu.dot_dimension_numbers<[1], [0], [0], [1], [0, 0, 1, 1], [], []>} : vector<2x128xbf16>, vector<128x128xbf16>, vector<2x128xf32> -> vector<2x128xf32>
    %c0_24 = arith.constant 0 : index
    %c0_25 = arith.constant 0 : index
    %31 = vector.load %arg8[%c0_24, %c0_25] : memref<1x128xf32, #tpu.memory_space<vmem>>, vector<1x128xf32>
    %32 = vector.broadcast %31 : vector<1x128xf32> to vector<2x128xf32>
    %33 = arith.addf %30, %32 : vector<2x128xf32>
    %c0_26 = arith.constant 0 : index
    %c0_27 = arith.constant 0 : index
    %34 = vector.load %arg9[%c0_26, %c0_27] : memref<2x128xf32, #tpu.memory_space<vmem>>, vector<2x128xf32>
    tpu.vector_store %arg9[%c0_26, %c0_27], %33 {strides = array<i32>} : memref<2x128xf32, #tpu.memory_space<vmem>>, vector<2x128xf32>,
    return
  }
}

</mosaic_0001>

<llo_original>
// kernel: correlation_forward.1
$region0: #{correlation_forward.1}
  #allocation0 [shape = 'u32[]', space=smem, size = 0x4, offset = 0x4, fixed_abs, tag = 'smem constant byte address 0x4 - core index']
  #allocation1 [shape = 'u32[144,128]{1,0:T(1,128)}', space=vmem, size = 0x12000, scoped, tag = 'internal scratch']
  %s0 = inlined_call_operand.hbm [shape: f32[2,8,64], index: 0, kind: input, shape index: {}]
  %s1 = inlined_call_operand.hbm [shape: f32[2,8,64], index: 1, kind: input, shape index: {}]
  %s2 = inlined_call_operand.hbm [shape: f32[2,8,8], index: 2, kind: input, shape index: {}]
  %s3 = inlined_call_operand.hbm [shape: bf16[64,128], index: 3, kind: input, shape index: {}]
  %s4 = inlined_call_operand.vmem [shape: f32[1,128], index: 4, kind: input, shape index: {}]
  %s5 = inlined_call_operand.hbm [shape: bf16[64,128], index: 5, kind: input, shape index: {}]
  %s6 = inlined_call_operand.vmem [shape: f32[1,128], index: 6, kind: input, shape index: {}]
  %s7 = inlined_call_operand.hbm [shape: bf16[128,128], index: 7, kind: input, shape index: {}]
  %s8 = inlined_call_operand.vmem [shape: f32[1,128], index: 8, kind: input, shape index: {}]
  %s9 = inlined_call_operand.hbm [shape: f32[2,128], index: 9, kind: output, shape index: {}]
  %s10 = sld [smem:[#allocation0]]
  $region70: #{correlation_forward.1} parent=0
    _
  %s12 = ssub.s32 1, %s10
  %s13 = scalar_select 0, %s12, %s10
  $region1: #{correlation_forward.1} parent=0
    #allocation2 [shape = 'u8[8192]{0}', space=vmem, size = 0x2000, scoped, tag = 'input window, operand 0, single buffered']
    #allocation3 [shape = 's32[1]{0}', space=sflag, size = 0x4, scoped, tag = 'scoped memory for correlation_forward.1']
    #allocation4 [shape = 's32[1]{0}', space=sflag, size = 0x4, scoped, tag = 'scoped memory for correlation_forward.1']
    #allocation5 [shape = 'u8[8192]{0}', space=vmem, size = 0x2000, scoped, tag = 'input window, operand 1, single buffered']
    #allocation6 [shape = 's32[1]{0}', space=sflag, size = 0x4, scoped, tag = 'scoped memory for correlation_forward.1']
    #allocation7 [shape = 'u8[8192]{0}', space=vmem, size = 0x2000, scoped, tag = 'input window, operand 2, single buffered']
    #allocation8 [shape = 'u8[16384]{0}', space=vmem, size = 0x4000, scoped, tag = 'input window, operand 3, single buffered']
    #allocation9 [shape = 's32[1]{0}', space=sflag, size = 0x4, scoped, tag = 'scoped memory for correlation_forward.1']
    #allocation10 [shape = 'u8[16384]{0}', space=vmem, size = 0x4000, scoped, tag = 'input window, operand 5, single buffered']
    #allocation11 [shape = 'u8[32768]{0}', space=vmem, size = 0x8000, scoped, tag = 'input window, operand 7, single buffered']
    #allocation12 [shape = 's32[1]{0}', space=sflag, size = 0x4, scoped, tag = 'scoped memory for correlation_forward.1']
    #allocation13 [shape = 'u8[1024]{0}', space=vmem, size = 0x400, scoped, tag = 'output window, operand 0, single buffered']
    %14 = vsyncpa [#allocation3], 0
    %15 = vsyncpa [#allocation6], 0
    %16 = vsyncpa [#allocation9], 0
    %17 = vsyncpa [#allocation12], 0
    %18 = vsyncpa [#allocation4], 0
    // Predicated region
    $region2: #{correlation_forward.1} parent=1 // pred_check
      _
    $region3: #{correlation_forward.1} parent=1 // pred_check_branch
      %20 = sbr.rel (0) target = $region5
    $region4: #{correlation_forward.1} parent=1 // pred_region
      %s22 = ssub.s32 256, 256
      %23 = vsyncadd [#allocation3], %s22
      %s24 = sshll.u32 [#allocation2], 4
      %s25 = int_to_ptr.vmem [resolvable:$true] %s24
      %30 = dma.hbm_to_vmem [thread:$0]  %s0, 256, %s25, [#allocation3], 128, 128, 8
    $region5: #{correlation_forward.1} parent=1 // pred_fallthru
      _
    // Predicated region
    $region6: #{correlation_forward.1} parent=1 // pred_check
      _
    $region7: #{correlation_forward.1} parent=1 // pred_check_branch
      %32 = sbr.rel (0) target = $region9
    $region8: #{correlation_forward.1} parent=1 // pred_region
      %s34 = ssub.s32 256, 256
      %35 = vsyncadd [#allocation6], %s34
      %s36 = sshll.u32 [#allocation5], 4
      %s37 = int_to_ptr.vmem [resolvable:$true] %s36
      %42 = dma.hbm_to_vmem [thread:$0]  %s1, 256, %s37, [#allocation6], 128, 128, 8
    $region9: #{correlation_forward.1} parent=1 // pred_fallthru
      _
    // Predicated region
    $region10: #{correlation_forward.1} parent=1 // pred_check
      _
    $region11: #{correlation_forward.1} parent=1 // pred_check_branch
      %44 = sbr.rel (0) target = $region13
    $region12: #{correlation_forward.1} parent=1 // pred_region
      %s46 = ssub.s32 256, 256
      %47 = vsyncadd [#allocation6], %s46
      %s48 = sshll.u32 [#allocation7], 4
      %s49 = int_to_ptr.vmem [resolvable:$true] %s48
      %54 = dma.hbm_to_vmem [thread:$0]  %s2, 256, %s49, [#allocation6], 128, 128, 8
    $region13: #{correlation_forward.1} parent=1 // pred_fallthru
      _
    // Predicated region
    $region14: #{correlation_forward.1} parent=1 // pred_check
      _
    $region15: #{correlation_forward.1} parent=1 // pred_check_branch
      %56 = sbr.rel (0) target = $region17
    $region16: #{correlation_forward.1} parent=1 // pred_region
      %s58 = ssub.s32 512, 512
      %59 = vsyncadd [#allocation9], %s58
      %s60 = sshll.u32 [#allocation8], 4
      %s61 = int_to_ptr.vmem [resolvable:$true] %s60
      %66 = dma.hbm_to_vmem [thread:$0]  %s3, 512, %s61, [#allocation9], 64, 64, 4
    $region17: #{correlation_forward.1} parent=1 // pred_fallthru
      _
    // Predicated region
    $region18: #{correlation_forward.1} parent=1 // pred_check
      _
    $region19: #{correlation_forward.1} parent=1 // pred_check_branch
      %68 = sbr.rel (0) target = $region21
    $region20: #{correlation_forward.1} parent=1 // pred_region
      _
    $region21: #{correlation_forward.1} parent=1 // pred_fallthru
      _
    // Predicated region
    $region22: #{correlation_forward.1} parent=1 // pred_check
      _
    $region23: #{correlation_forward.1} parent=1 // pred_check_branch
      %70 = sbr.rel (0) target = $region25
    $region24: #{correlation_forward.1} parent=1 // pred_region
      %s72 = ssub.s32 512, 512
      %73 = vsyncadd [#allocation9], %s72
      %s74 = sshll.u32 [#allocation10], 4
      %s75 = int_to_ptr.vmem [resolvable:$true] %s74
      %80 = dma.hbm_to_vmem [thread:$0]  %s5, 512, %s75, [#allocation9], 64, 64, 4
    $region25: #{correlation_forward.1} parent=1 // pred_fallthru
      _
    // Predicated region
    $region26: #{correlation_forward.1} parent=1 // pred_check
      _
    $region27: #{correlation_forward.1} parent=1 // pred_check_branch
      %82 = sbr.rel (0) target = $region29
    $region28: #{correlation_forward.1} parent=1 // pred_region
      _
    $region29: #{correlation_forward.1} parent=1 // pred_fallthru
      _
    // Predicated region
    $region30: #{correlation_forward.1} parent=1 // pred_check
      _
    $region31: #{correlation_forward.1} parent=1 // pred_check_branch
      %84 = sbr.rel (0) target = $region33
    $region32: #{correlation_forward.1} parent=1 // pred_region
      %s86 = ssub.s32 1024, 1024
      %87 = vsyncadd [#allocation12], %s86
      %s88 = sshll.u32 [#allocation11], 4
      %s89 = int_to_ptr.vmem [resolvable:$true] %s88
      %94 = dma.hbm_to_vmem [thread:$0]  %s7, 1024, %s89, [#allocation12], 64, 64, 4
    $region33: #{correlation_forward.1} parent=1 // pred_fallthru
      _
    // Predicated region
    $region34: #{correlation_forward.1} parent=1 // pred_check
      _
    $region35: #{correlation_forward.1} parent=1 // pred_check_branch
      %96 = sbr.rel (0) target = $region37
    $region36: #{correlation_forward.1} parent=1 // pred_region
      _
    $region37: #{correlation_forward.1} parent=1 // pred_fallthru
      _
    // Predicated region
    $region38: #{correlation_forward.1} parent=1 // pred_check
      _
    $region39: #{correlation_forward.1} parent=1 // pred_check_branch
      %98 = sbr.rel (0) target = $region41
    $region40: #{correlation_forward.1} parent=1 // pred_region
      %99 = dma.done [#allocation3], 256
    $region41: #{correlation_forward.1} parent=1 // pred_fallthru
      _
    // Predicated region
    $region42: #{correlation_forward.1} parent=1 // pred_check
      _
    $region43: #{correlation_forward.1} parent=1 // pred_check_branch
      %101 = sbr.rel (0) target = $region45
    $region44: #{correlation_forward.1} parent=1 // pred_region
      %102 = dma.done [#allocation6], 256
    $region45: #{correlation_forward.1} parent=1 // pred_fallthru
      _
    // Predicated region
    $region46: #{correlation_forward.1} parent=1 // pred_check
      _
    $region47: #{correlation_forward.1} parent=1 // pred_check_branch
      %104 = sbr.rel (0) target = $region49
    $region48: #{correlation_forward.1} parent=1 // pred_region
      %105 = dma.done [#allocation6], 256
    $region49: #{correlation_forward.1} parent=1 // pred_fallthru
      _
    // Predicated region
    $region50: #{correlation_forward.1} parent=1 // pred_check
      _
    $region51: #{correlation_forward.1} parent=1 // pred_check_branch
      %107 = sbr.rel (0) target = $region53
    $region52: #{correlation_forward.1} parent=1 // pred_region
      %108 = dma.done [#allocation9], 512
    $region53: #{correlation_forward.1} parent=1 // pred_fallthru
      _
    // Predicated region
    $region54: #{correlation_forward.1} parent=1 // pred_check
      _
    $region55: #{correlation_forward.1} parent=1 // pred_check_branch
      %110 = sbr.rel (0) target = $region57
    $region56: #{correlation_forward.1} parent=1 // pred_region
      %111 = dma.done [#allocation9], 512
    $region57: #{correlation_forward.1} parent=1 // pred_fallthru
      _
    // Predicated region
    $region58: #{correlation_forward.1} parent=1 // pred_check
      _
    $region59: #{correlation_forward.1} parent=1 // pred_check_branch
      %113 = sbr.rel (0) target = $region61
    $region60: #{correlation_forward.1} parent=1 // pred_region
      %114 = dma.done [#allocation12], 1024
    $region61: #{correlation_forward.1} parent=1 // pred_fallthru
      _
    %v116 = vld [vmem:[#allocation2] sm:$0xff]
    %v117 = vld [vmem:[#allocation2 + $0x8] sm:$0xff]
    %v118 = vpack.c.bf16 %v117, %v116
    %v119 = vld [vmem:[#allocation5] sm:$0xff]
    %v120 = vld [vmem:[#allocation5 + $0x8] sm:$0xff]
    %v121 = vpack.c.bf16 %v120, %v119
    %v122 = vld [vmem:[#allocation8] sm:$0xf]
    %v123 = vld [vmem:[#allocation8 + $0x4] sm:$0xf]
    %v124 = vld [vmem:[#allocation8 + $0x8] sm:$0xf]
    %v125 = vld [vmem:[#allocation8 + $0xc] sm:$0xf]
    %v126 = vld [vmem:[#allocation8 + $0x10] sm:$0xf]
    %v127 = vld [vmem:[#allocation8 + $0x14] sm:$0xf]
    %v128 = vld [vmem:[#allocation8 + $0x18] sm:$0xf]
    %v129 = vld [vmem:[#allocation8 + $0x1c] sm:$0xf]
    %v130 = vld [vmem:[#allocation10] sm:$0xf]
    %v131 = vld [vmem:[#allocation10 + $0x4] sm:$0xf]
    %v132 = vld [vmem:[#allocation10 + $0x8] sm:$0xf]
    %v133 = vld [vmem:[#allocation10 + $0xc] sm:$0xf]
    %v134 = vld [vmem:[#allocation10 + $0x10] sm:$0xf]
    %v135 = vld [vmem:[#allocation10 + $0x14] sm:$0xf]
    %v136 = vld [vmem:[#allocation10 + $0x18] sm:$0xf]
    %v137 = vld [vmem:[#allocation10 + $0x1c] sm:$0xf]
    %v138 = vld [vmem:[%s4] sm:$0x1]
    %v140 = vlaneseq
    %v141 = vshrl.u32 %v140, 7
    %v142 = vsub.s32 0, %v141
    %v143 = vrot.slane %v138, %v142
    %v153 = vunpack.c.l.b16 %v122
    %v154 = vunpack.c.l.b16 %v123
    %v155 = vunpack.c.l.b16 %v124
    %v156 = vunpack.c.l.b16 %v125
    %v157 = vunpack.c.l.b16 %v126
    %v158 = vunpack.c.l.b16 %v127
    %v159 = vunpack.c.l.b16 %v128
    %v160 = vunpack.c.l.b16 %v129
    %v161 = vpack.c.b16 %v154, %v153
    %v162 = vpack.c.b16 %v156, %v155
    %v163 = vpack.c.b16 %v158, %v157
    %v164 = vpack.c.b16 %v160, %v159
    %vm169 = vcmask 523264
    %v171 = vsel %vm169, %v118, 0
    %173 = vmatprep.subr.bf16.mxu0 0
    %174 = vmatpush1.bf16.msra.mxu0 0
    %175 = vmatprep.subr.bf16.mxu0 0
    %176 = vmatpush1.bf16.msra.mxu0 0
    %177 = vmatprep.subr.bf16.mxu0 0
    %178 = vmatpush1.bf16.msra.mxu0 0
    %179 = vmatprep.subr.bf16.mxu0 0
    %180 = vmatpush1.bf16.msra.mxu0 0
    %181 = vmatprep.subr.bf16.mxu0 0
    %182 = vmatpush1.bf16.msra.mxu0 %v164
    %183 = vmatprep.subr.bf16.mxu0 0
    %184 = vmatpush1.bf16.msra.mxu0 %v163
    %185 = vmatprep.subr.bf16.mxu0 0
    %186 = vmatpush1.bf16.msra.mxu0 %v162
    %187 = vmatprep.subr.bf16.mxu0 0
    %188 = vmatpush1.bf16.msra.mxu0 %v161
    %189 = vmatprep.subr.bf16.mxu0 0
    %190 = vmatpush2.bf16.msra.mxu0 0
    %191 = vmatprep.subr.bf16.mxu0 0
    %192 = vmatpush2.bf16.msra.mxu0 0
    %193 = vmatprep.subr.bf16.mxu0 0
    %194 = vmatpush2.bf16.msra.mxu0 0
    %195 = vmatprep.subr.bf16.mxu0 0
    %196 = vmatpush2.bf16.msra.mxu0 0
    %197 = vmatprep.subr.bf16.mxu0 0
    %198 = vmatpush2.bf16.msra.mxu0 0
    %199 = vmatprep.subr.bf16.mxu0 0
    %200 = vmatpush2.bf16.msra.mxu0 0
    %201 = vmatprep.subr.bf16.mxu0 0
    %202 = vmatpush2.bf16.msra.mxu0 0
    %203 = vmatprep.subr.bf16.mxu0 0
    %204 = vmatpush2.bf16.msra.mxu0 0
    %205 = vmatprep.mubr.bf16.mxu0 0
    %206 = vmatmul.mubr.bf16.gmra.mxu0 %v171
    %v207 = vpop.f32.mrf.mxu0
    %v208 = vadd.f32 %v143, %v207
    %v209 = vpop.f32.mrf.mxu0
    %v210 = vpop.f32.mrf.mxu0
    %v211 = vadd.f32 %v143, %v210
    %v212 = vpop.f32.mrf.mxu0
    %213 = vdwg.mxu0
    %v214 = vmax.f32 %v208, 0.0
    %v215 = vmax.f32 %v211, 0.0
    %v216 = vld [vmem:[%s6] sm:$0x1]
    %v218 = vlaneseq
    %v219 = vshrl.u32 %v218, 7
    %v220 = vsub.s32 0, %v219
    %v221 = vrot.slane %v216, %v220
    %v231 = vunpack.c.l.b16 %v130
    %v232 = vunpack.c.l.b16 %v131
    %v233 = vunpack.c.l.b16 %v132
    %v234 = vunpack.c.l.b16 %v133
    %v235 = vunpack.c.l.b16 %v134
    %v236 = vunpack.c.l.b16 %v135
    %v237 = vunpack.c.l.b16 %v136
    %v238 = vunpack.c.l.b16 %v137
    %v239 = vpack.c.b16 %v232, %v231
    %v240 = vpack.c.b16 %v234, %v233
    %v241 = vpack.c.b16 %v236, %v235
    %v242 = vpack.c.b16 %v238, %v237
    %v248 = vsel %vm169, %v121, 0
    %250 = vmatprep.subr.bf16.mxu0 0
    %251 = vmatpush1.bf16.msra.mxu0 0
    %252 = vmatprep.subr.bf16.mxu0 0
    %253 = vmatpush1.bf16.msra.mxu0 0
    %254 = vmatprep.subr.bf16.mxu0 0
    %255 = vmatpush1.bf16.msra.mxu0 0
    %256 = vmatprep.subr.bf16.mxu0 0
    %257 = vmatpush1.bf16.msra.mxu0 0
    %258 = vmatprep.subr.bf16.mxu0 0
    %259 = vmatpush1.bf16.msra.mxu0 %v242
    %260 = vmatprep.subr.bf16.mxu0 0
    %261 = vmatpush1.bf16.msra.mxu0 %v241
    %262 = vmatprep.subr.bf16.mxu0 0
    %263 = vmatpush1.bf16.msra.mxu0 %v240
    %264 = vmatprep.subr.bf16.mxu0 0
    %265 = vmatpush1.bf16.msra.mxu0 %v239
    %266 = vmatprep.subr.bf16.mxu0 0
    %267 = vmatpush2.bf16.msra.mxu0 0
    %268 = vmatprep.subr.bf16.mxu0 0
    %269 = vmatpush2.bf16.msra.mxu0 0
    %270 = vmatprep.subr.bf16.mxu0 0
    %271 = vmatpush2.bf16.msra.mxu0 0
    %272 = vmatprep.subr.bf16.mxu0 0
    %273 = vmatpush2.bf16.msra.mxu0 0
    %274 = vmatprep.subr.bf16.mxu0 0
    %275 = vmatpush2.bf16.msra.mxu0 0
    %276 = vmatprep.subr.bf16.mxu0 0
    %277 = vmatpush2.bf16.msra.mxu0 0
    %278 = vmatprep.subr.bf16.mxu0 0
    %279 = vmatpush2.bf16.msra.mxu0 0
    %280 = vmatprep.subr.bf16.mxu0 0
    %281 = vmatpush2.bf16.msra.mxu0 0
    %282 = vmatprep.mubr.bf16.mxu0 0
    %283 = vmatmul.mubr.bf16.gmra.mxu0 %v248
    %v284 = vpop.f32.mrf.mxu0
    %v285 = vadd.f32 %v221, %v284
    %v286 = vpop.f32.mrf.mxu0
    %v287 = vpop.f32.mrf.mxu0
    %v288 = vadd.f32 %v221, %v287
    %v289 = vpop.f32.mrf.mxu0
    %290 = vdwg.mxu0
    %v291 = vmax.f32 %v285, 0.0
    %v292 = vmax.f32 %v288, 0.0
    %v293 = vld [vmem:[#allocation7] sm:$0xff]
    %v294 = vld [vmem:[#allocation7 + $0x8] sm:$0xff]
    %v295 = vpack.c.bf16 %v293, %v293
    %v296 = vpack.c.bf16 %v294, %v294
    %v297 = vpack.c.bf16 %v291, %v291
    %v298 = vpack.c.bf16 %v292, %v292
    %vm299 = vcmask 64512
    %v301 = vsel %vm299, %v295, 0
    %vm303 = vcmask 1043456
    %v305 = vsel %vm303, %v297, 0
    %307 = vmatprep.subr.bf16.mxu0 0
    %308 = vmatpush1.bf16.msra.mxu0 0
    %309 = vmatprep.subr.bf16.mxu0 0
    %310 = vmatpush1.bf16.msra.mxu0 0
    %311 = vmatprep.subr.bf16.mxu0 0
    %312 = vmatpush1.bf16.msra.mxu0 0
    %313 = vmatprep.subr.bf16.mxu0 0
    %314 = vmatpush1.bf16.msra.mxu0 0
    %315 = vmatprep.subr.bf16.mxu0 0
    %316 = vmatpush1.bf16.msra.mxu0 0
    %317 = vmatprep.subr.bf16.mxu0 0
    %318 = vmatpush1.bf16.msra.mxu0 0
    %319 = vmatprep.subr.bf16.mxu0 0
    %320 = vmatpush1.bf16.msra.mxu0 0
    %321 = vmatprep.subr.bf16.mxu0 0
    %322 = vmatpush1.bf16.msra.mxu0 %v305
    %323 = vmatprep.subr.bf16.mxu0 0
    %324 = vmatpush2.bf16.msra.mxu0 0
    %325 = vmatprep.subr.bf16.mxu0 0
    %326 = vmatpush2.bf16.msra.mxu0 0
    %327 = vmatprep.subr.bf16.mxu0 0
    %328 = vmatpush2.bf16.msra.mxu0 0
    %329 = vmatprep.subr.bf16.mxu0 0
    %330 = vmatpush2.bf16.msra.mxu0 0
    %331 = vmatprep.subr.bf16.mxu0 0
    %332 = vmatpush2.bf16.msra.mxu0 0
    %333 = vmatprep.subr.bf16.mxu0 0
    %334 = vmatpush2.bf16.msra.mxu0 0
    %335 = vmatprep.subr.bf16.mxu0 0
    %336 = vmatpush2.bf16.msra.mxu0 0
    %337 = vmatprep.subr.bf16.mxu0 0
    %338 = vmatpush2.bf16.msra.mxu0 0
    %339 = vmatprep.mubr.bf16.mxu0 0
    %340 = vmatmul.mubr.bf16.gmra.mxu0 %v301
    %v341 = vpop.f32.mrf.mxu0
    %v342 = vadd.f32 0.0, %v341
    %v343 = vpop.f32.mrf.mxu0
    %v344 = vpop.f32.mrf.mxu0
    %v345 = vpop.f32.mrf.mxu0
    %346 = vdwg.mxu0
    %v348 = vsel %vm299, %v296, 0
    %v351 = vsel %vm303, %v298, 0
    %353 = vmatprep.subr.bf16.mxu0 0
    %354 = vmatpush1.bf16.msra.mxu0 0
    %355 = vmatprep.subr.bf16.mxu0 0
    %356 = vmatpush1.bf16.msra.mxu0 0
    %357 = vmatprep.subr.bf16.mxu0 0
    %358 = vmatpush1.bf16.msra.mxu0 0
    %359 = vmatprep.subr.bf16.mxu0 0
    %360 = vmatpush1.bf16.msra.mxu0 0
    %361 = vmatprep.subr.bf16.mxu0 0
    %362 = vmatpush1.bf16.msra.mxu0 0
    %363 = vmatprep.subr.bf16.mxu0 0
    %364 = vmatpush1.bf16.msra.mxu0 0
    %365 = vmatprep.subr.bf16.mxu0 0
    %366 = vmatpush1.bf16.msra.mxu0 0
    %367 = vmatprep.subr.bf16.mxu0 0
    %368 = vmatpush1.bf16.msra.mxu0 %v351
    %369 = vmatprep.subr.bf16.mxu0 0
    %370 = vmatpush2.bf16.msra.mxu0 0
    %371 = vmatprep.subr.bf16.mxu0 0
    %372 = vmatpush2.bf16.msra.mxu0 0
    %373 = vmatprep.subr.bf16.mxu0 0
    %374 = vmatpush2.bf16.msra.mxu0 0
    %375 = vmatprep.subr.bf16.mxu0 0
    %376 = vmatpush2.bf16.msra.mxu0 0
    %377 = vmatprep.subr.bf16.mxu0 0
    %378 = vmatpush2.bf16.msra.mxu0 0
    %379 = vmatprep.subr.bf16.mxu0 0
    %380 = vmatpush2.bf16.msra.mxu0 0
    %381 = vmatprep.subr.bf16.mxu0 0
    %382 = vmatpush2.bf16.msra.mxu0 0
    %383 = vmatprep.subr.bf16.mxu0 0
    %384 = vmatpush2.bf16.msra.mxu0 0
    %385 = vmatprep.mubr.bf16.mxu0 0
    %386 = vmatmul.mubr.bf16.gmra.mxu0 %v348
    %v387 = vpop.f32.mrf.mxu0
    %v388 = vadd.f32 0.0, %v387
    %v389 = vpop.f32.mrf.mxu0
    %v390 = vpop.f32.mrf.mxu0
    %v391 = vpop.f32.mrf.mxu0
    %392 = vdwg.mxu0
    %v393 = vmul.f32 %v214, %v342
    %v394 = vmul.f32 %v215, %v388
    %v395 = vrot.slane %v393, 4
    %v396 = vadd.f32 %v393, %v395
    %v397 = vrot.slane %v396, 2
    %v398 = vadd.f32 %v396, %v397
    %v399 = vrot.slane %v398, 1
    %v400 = vadd.f32 %v398, %v399
    %v401 = vrot.slane %v394, 4
    %v402 = vadd.f32 %v394, %v401
    %v403 = vrot.slane %v402, 2
    %v404 = vadd.f32 %v402, %v403
    %v405 = vrot.slane %v404, 1
    %v406 = vadd.f32 %v404, %v405
    %v407 = vpack.c.bf16 %v400, %v400
    %v408 = vpack.c.bf16 %v406, %v406
    %v409 = vld [vmem:[#allocation11] sm:$0xf]
    %v410 = vld [vmem:[#allocation11 + $0x4] sm:$0xf]
    %v411 = vld [vmem:[#allocation11 + $0x8] sm:$0xf]
    %v412 = vld [vmem:[#allocation11 + $0xc] sm:$0xf]
    %v413 = vld [vmem:[#allocation11 + $0x10] sm:$0xf]
    %v414 = vld [vmem:[#allocation11 + $0x14] sm:$0xf]
    %v415 = vld [vmem:[#allocation11 + $0x18] sm:$0xf]
    %v416 = vld [vmem:[#allocation11 + $0x1c] sm:$0xf]
    %v417 = vld [vmem:[#allocation11 + $0x20] sm:$0xf]
    %v418 = vld [vmem:[#allocation11 + $0x24] sm:$0xf]
    %v419 = vld [vmem:[#allocation11 + $0x28] sm:$0xf]
    %v420 = vld [vmem:[#allocation11 + $0x2c] sm:$0xf]
    %v421 = vld [vmem:[#allocation11 + $0x30] sm:$0xf]
    %v422 = vld [vmem:[#allocation11 + $0x34] sm:$0xf]
    %v423 = vld [vmem:[#allocation11 + $0x38] sm:$0xf]
    %v424 = vld [vmem:[#allocation11 + $0x3c] sm:$0xf]
    %v425 = vld [vmem:[%s8] sm:$0x1]
    %v427 = vlaneseq
    %v428 = vshrl.u32 %v427, 7
    %v429 = vsub.s32 0, %v428
    %v430 = vrot.slane %v425, %v429
    %v434 = vunpack.c.l.b16 %v407
    %v435 = vunpack.c.l.b16 %v408
    %vm436 = vcmask 1041409
    %v437 = vsel %vm436, %v435, %v434
    %v438 = vpack.c.b16 %v437, %v437
    %v456 = vunpack.c.l.b16 %v409
    %v457 = vunpack.c.l.b16 %v410
    %v458 = vunpack.c.l.b16 %v411
    %v459 = vunpack.c.l.b16 %v412
    %v460 = vunpack.c.l.b16 %v413
    %v461 = vunpack.c.l.b16 %v414
    %v462 = vunpack.c.l.b16 %v415
    %v463 = vunpack.c.l.b16 %v416
    %v464 = vunpack.c.l.b16 %v417
    %v465 = vunpack.c.l.b16 %v418
    %v466 = vunpack.c.l.b16 %v419
    %v467 = vunpack.c.l.b16 %v420
    %v468 = vunpack.c.l.b16 %v421
    %v469 = vunpack.c.l.b16 %v422
    %v470 = vunpack.c.l.b16 %v423
    %v471 = vunpack.c.l.b16 %v424
    %v472 = vpack.c.b16 %v457, %v456
    %v473 = vpack.c.b16 %v459, %v458
    %v474 = vpack.c.b16 %v461, %v460
    %v475 = vpack.c.b16 %v463, %v462
    %v476 = vpack.c.b16 %v465, %v464
    %v477 = vpack.c.b16 %v467, %v466
    %v478 = vpack.c.b16 %v469, %v468
    %v479 = vpack.c.b16 %v471, %v470
    %488 = vmatprep.subr.bf16.mxu0 0
    %489 = vmatpush1.bf16.msra.mxu0 %v479
    %490 = vmatprep.subr.bf16.mxu0 0
    %491 = vmatpush1.bf16.msra.mxu0 %v478
    %492 = vmatprep.subr.bf16.mxu0 0
    %493 = vmatpush1.bf16.msra.mxu0 %v477
    %494 = vmatprep.subr.bf16.mxu0 0
    %495 = vmatpush1.bf16.msra.mxu0 %v476
    %496 = vmatprep.subr.bf16.mxu0 0
    %497 = vmatpush1.bf16.msra.mxu0 %v475
    %498 = vmatprep.subr.bf16.mxu0 0
    %499 = vmatpush1.bf16.msra.mxu0 %v474
    %500 = vmatprep.subr.bf16.mxu0 0
    %501 = vmatpush1.bf16.msra.mxu0 %v473
    %502 = vmatprep.subr.bf16.mxu0 0
    %503 = vmatpush1.bf16.msra.mxu0 %v472
    %504 = vmatprep.subr.bf16.mxu0 0
    %505 = vmatpush2.bf16.msra.mxu0 0
    %506 = vmatprep.subr.bf16.mxu0 0
    %507 = vmatpush2.bf16.msra.mxu0 0
    %508 = vmatprep.subr.bf16.mxu0 0
    %509 = vmatpush2.bf16.msra.mxu0 0
    %510 = vmatprep.subr.bf16.mxu0 0
    %511 = vmatpush2.bf16.msra.mxu0 0
    %512 = vmatprep.subr.bf16.mxu0 0
    %513 = vmatpush2.bf16.msra.mxu0 0
    %514 = vmatprep.subr.bf16.mxu0 0
    %515 = vmatpush2.bf16.msra.mxu0 0
    %516 = vmatprep.subr.bf16.mxu0 0
    %517 = vmatpush2.bf16.msra.mxu0 0
    %518 = vmatprep.subr.bf16.mxu0 0
    %519 = vmatpush2.bf16.msra.mxu0 0
    %520 = vmatprep.mubr.bf16.mxu0 0
    %521 = vmatmul.mubr.bf16.gmra.mxu0 %v438
    %v522 = vpop.f32.mrf.mxu0
    %v523 = vadd.f32 %v430, %v522
    %v524 = vpop.f32.mrf.mxu0
    %v525 = vpop.f32.mrf.mxu0
    %v526 = vpop.f32.mrf.mxu0
    %527 = vdwg.mxu0
    %528 = vst [vmem:[#allocation13] sm:$0x3] %v523
    // Predicated region
    $region62: #{correlation_forward.1} parent=1 // pred_check
      _
    $region63: #{correlation_forward.1} parent=1 // pred_check_branch
      %530 = sbr.rel (0) target = $region65
    $region64: #{correlation_forward.1} parent=1 // pred_region
      %s532 = ssub.s32 32, 32
      %533 = vsyncadd [#allocation4], %s532
      %s535 = sshll.u32 [#allocation13], 4
      %s536 = int_to_ptr.vmem [resolvable:$true] %s535
      %538 = dma.vmem_to_hbm [thread:$0]  %s536, 32, %s9, [#allocation4]
    $region65: #{correlation_forward.1} parent=1 // pred_fallthru
      _
    // Predicated region
    $region66: #{correlation_forward.1} parent=1 // pred_check
      _
    $region67: #{correlation_forward.1} parent=1 // pred_check_branch
      %540 = sbr.rel (0) target = $region69
    $region68: #{correlation_forward.1} parent=1 // pred_region
      %541 = dma.done [#allocation4], 32
    $region69: #{correlation_forward.1} parent=1 // pred_fallthru
      _
    %542 = vsyncpa [#allocation3], 1
    %543 = vsyncpa [#allocation6], 1
    %544 = vsyncpa [#allocation9], 1
    %545 = vsyncpa [#allocation12], 1
    %546 = vsyncpa [#allocation4], 1

</llo_original>
